<compile_context>
chip_gen: v7x
topology: tpu7x:2x2x1
jax: 0.10.0
libtpu: 0.0.40
codegen_flags: <defaults>
</compile_context>

<pallas_src>
import functools

import jax
import jax.numpy as jnp
from jax.experimental import pallas as pl
from jax.experimental.pallas import tpu as pltpu

LN_EPS = 1e-5


def _attention_output_kernel(x_ref, w_ref, p_ref, o_ref, *, d_model, d_ff, eps):
    """One row-tile per grid step. x_ref is (tile_rows, d_model)."""
    x = x_ref[...]                                   # (rows, d_model)

    # Static slices of the packed slabs (zero-cost views).
    w1 = w_ref[:d_model, :]                          # (d_model, d_ff)
    w2 = w_ref[d_model:, :d_model]                   # (d_ff, d_model)
    b1 = p_ref[0:1, :]                               # (1, d_ff)
    b2 = p_ref[1:2, :d_model]                        # (1, d_model)
    gamma = p_ref[2:3, :d_model]                     # (1, d_model)
    beta = p_ref[3:4, :d_model]                      # (1, d_model)

    # expand: Linear(d_model -> 2*d_model) + ReLU
    h = jnp.dot(x, w1, preferred_element_type=jnp.float32) + b1
    h = jnp.maximum(h, 0.0)

    # squeeze: Linear(2*d_model -> d_model); dropout = Identity (p=None)
    h = jnp.dot(h, w2, preferred_element_type=jnp.float32) + b2

    # residual + one-pass LayerNorm over the channel dim
    y = x + h
    inv_d = 1.0 / d_model
    s1 = jnp.sum(y, axis=-1, keepdims=True)
    s2 = jnp.sum(y * y, axis=-1, keepdims=True)
    mean = s1 * inv_d
    var = jnp.maximum(s2 * inv_d - mean * mean, 0.0)
    inv = jax.lax.rsqrt(var + eps)

    o_ref[...] = (y - mean) * (inv * gamma) + beta   # single store per tile


def _pick_tile_rows(rows):
    """Single program for small inputs; row tiles (megacore-shardable) for big ones."""
    if rows <= 512:
        return rows
    for t in (1024, 512, 256, 128, 64, 32, 16, 8):
        if rows % t == 0:
            return t
    return rows  # awkward row count: fall back to one program


@jax.jit
def attention_output(x, w1, b1, w2, b2, gamma, beta):
    """Fused AttentionOutput forward.

    x:     (..., d_model)
    w1:    (2*d_model, d_model)   PyTorch Linear (out, in) layout
    b1:    (2*d_model,)
    w2:    (d_model, 2*d_model)
    b2:    (d_model,)
    gamma, beta: (d_model,)       LayerNorm affine
    """
    d_model = x.shape[-1]
    d_ff = w1.shape[0]
    orig_shape = x.shape
    rows = x.size // d_model

    x2d = x.reshape(rows, d_model).astype(jnp.float32)

    # ---- pack parameters into 2 slabs (3 input DMAs total) ----
    w1_t = w1.T.astype(jnp.float32)                              # (d_model, d_ff)
    w2_t = w2.T.astype(jnp.float32)                              # (d_ff, d_model)
    w2_t_pad = jnp.pad(w2_t, ((0, 0), (0, d_ff - d_model)))      # (d_ff, d_ff)
    w_slab = jnp.concatenate([w1_t, w2_t_pad], axis=0)           # (d_model+d_ff, d_ff)

    def _row(v):
        v = v.astype(jnp.float32).reshape(1, -1)
        return jnp.pad(v, ((0, 0), (0, d_ff - v.shape[-1])))
    p_slab = jnp.concatenate(
        [_row(b1), _row(b2), _row(gamma), _row(beta)], axis=0)   # (4, d_ff)
    p_slab = jnp.pad(p_slab, ((0, 4), (0, 0)))                   # (8, d_ff), sublane-aligned

    tile = _pick_tile_rows(rows)
    grid = (rows // tile,)

    kernel = functools.partial(
        _attention_output_kernel, d_model=d_model, d_ff=d_ff, eps=LN_EPS)

    cost = pl.CostEstimate(
        flops=2 * rows * d_model * d_ff * 2 + 8 * rows * d_model,
        transcendentals=rows,
        bytes_accessed=4 * (2 * rows * d_model + w_slab.size + p_slab.size),
    )

    out2d = pl.pallas_call(
        kernel,
        out_shape=jax.ShapeDtypeStruct((rows, d_model), jnp.float32),
        grid=grid,
        in_specs=[
            pl.BlockSpec((tile, d_model), lambda i: (i, 0)),          # x row tile
            pl.BlockSpec((d_model + d_ff, d_ff), lambda i: (0, 0)),   # weight slab (grid-invariant)
            pl.BlockSpec((8, d_ff), lambda i: (0, 0)),                # bias/LN slab (grid-invariant)
        ],
        out_specs=pl.BlockSpec((tile, d_model), lambda i: (i, 0)),
        compiler_params=pltpu.CompilerParams(
            dimension_semantics=("parallel",)),
        cost_estimate=cost,
    )(x2d, w_slab, p_slab)

    return out2d.reshape(orig_shape)


def ref_forward(x, w1, b1, w2, b2, gamma, beta):
    """Pure-JAX reference mirroring the PyTorch forward (weights in (out, in))."""
    h = x @ w1.T + b1
    h = jnp.maximum(h, 0.0)
    h = h @ w2.T + b2
    y = x + h
    mean = y.mean(-1, keepdims=True)
    var = ((y - mean) ** 2).mean(-1, keepdims=True)
    return (y - mean) / jnp.sqrt(var + LN_EPS) * gamma + beta


if __name__ == "__main__":
    B, N, D_MODEL = 2, 8, 32
    D_FF = 2 * D_MODEL

    key = jax.random.PRNGKey(0)
    ks = jax.random.split(key, 7)

    x = jax.random.normal(ks[0], (B, N, D_MODEL), jnp.float32)

    # deterministic synthetic parameters (PyTorch Linear weight layout is (out, in))
    w1 = 0.1 * jax.random.normal(ks[1], (D_FF, D_MODEL), jnp.float32)
    b1 = 0.1 * jax.random.normal(ks[2], (D_FF,), jnp.float32)
    w2 = 0.1 * jax.random.normal(ks[3], (D_MODEL, D_FF), jnp.float32)
    b2 = 0.1 * jax.random.normal(ks[4], (D_MODEL,), jnp.float32)
    gamma = 1.0 + 0.1 * jax.random.normal(ks[5], (D_MODEL,), jnp.float32)
    beta = 0.1 * jax.random.normal(ks[6], (D_MODEL,), jnp.float32)

    out = attention_output(x, w1, b1, w2, b2, gamma, beta)
    out = jax.block_until_ready(out)

    out_ref = ref_forward(x, w1, b1, w2, b2, gamma, beta)

    assert out.shape == (B, N, D_MODEL)
    assert jnp.allclose(out, out_ref, atol=1e-4, rtol=1e-4)

    print("KERNEL_OK")
</pallas_src>

<mosaic_0001>
module attributes {stable_mosaic.version = 11 : i64} {
  func.func @_attention_output_kernel(%arg0: i32, %arg1: memref<16x32xf32, #tpu.memory_space<vmem>>, %arg2: memref<96x64xf32, #tpu.memory_space<vmem>>, %arg3: memref<8x64xf32, #tpu.memory_space<vmem>>, %arg4: memref<16x32xf32, #tpu.memory_space<vmem>>) attributes {dimension_semantics = [#tpu.dimension_semantics<parallel>], iteration_bounds = array<i64: 1>, scalar_prefetch = 0 : i64, scratch_operands = 0 : i64, tpu.core_type = #tpu.core_type<tc>, window_params = [{transform_indices = @transform_0, window_bounds = array<i64: 16, 32>}, {pipeline_mode = #tpu.pipeline_mode<synchronous>, transform_indices = @transform_1, window_bounds = array<i64: 96, 64>}, {pipeline_mode = #tpu.pipeline_mode<synchronous>, transform_indices = @transform_2, window_bounds = array<i64: 8, 64>}, {transform_indices = @transform_3, window_bounds = array<i64: 16, 32>}]} {
    %c0 = arith.constant 0 : index
    %c0_0 = arith.constant 0 : index
    %0 = vector.load %arg1[%c0, %c0_0] : memref<16x32xf32, #tpu.memory_space<vmem>>, vector<16x32xf32>
    %c0_1 = arith.constant 0 : index
    %c0_2 = arith.constant 0 : index
    %1 = vector.load %arg2[%c0_1, %c0_2] : memref<96x64xf32, #tpu.memory_space<vmem>>, vector<32x64xf32>
    %c32 = arith.constant 32 : index
    %c0_3 = arith.constant 0 : index
    %2 = vector.load %arg2[%c32, %c0_3] : memref<96x64xf32, #tpu.memory_space<vmem>>, vector<64x32xf32>
    %c0_4 = arith.constant 0 : index
    %c0_5 = arith.constant 0 : index
    %3 = vector.load %arg3[%c0_4, %c0_5] : memref<8x64xf32, #tpu.memory_space<vmem>>, vector<1x64xf32>
    %c1 = arith.constant 1 : index
    %c0_6 = arith.constant 0 : index
    %4 = vector.load %arg3[%c1, %c0_6] : memref<8x64xf32, #tpu.memory_space<vmem>>, vector<1x32xf32>
    %c2 = arith.constant 2 : index
    %c0_7 = arith.constant 0 : index
    %5 = vector.load %arg3[%c2, %c0_7] : memref<8x64xf32, #tpu.memory_space<vmem>>, vector<1x32xf32>
    %c3 = arith.constant 3 : index
    %c0_8 = arith.constant 0 : index
    %6 = vector.load %arg3[%c3, %c0_8] : memref<8x64xf32, #tpu.memory_space<vmem>>, vector<1x32xf32>
    %cst = arith.constant dense<0.000000e+00> : vector<16x64xf32>
    %7 = tpu.matmul %0, %1, %cst {dimension_numbers = #tpu.dot_dimension_numbers<[1], [0], [0], [1], [0, 0, 1, 1], [], []>} : vector<16x32xf32>, vector<32x64xf32>, vector<16x64xf32> -> vector<16x64xf32>
    %8 = vector.broadcast %3 : vector<1x64xf32> to vector<16x64xf32>
    %9 = arith.addf %7, %8 : vector<16x64xf32>
    %cst_9 = arith.constant 0.000000e+00 : f32
    %10 = vector.broadcast %cst_9 : f32 to vector<16x64xf32>
    %11 = arith.maximumf %9, %10 : vector<16x64xf32>
    %cst_10 = arith.constant dense<0.000000e+00> : vector<16x32xf32>
    %12 = tpu.matmul %11, %2, %cst_10 {dimension_numbers = #tpu.dot_dimension_numbers<[1], [0], [0], [1], [0, 0, 1, 1], [], []>} : vector<16x64xf32>, vector<64x32xf32>, vector<16x32xf32> -> vector<16x32xf32>
    %13 = vector.broadcast %4 : vector<1x32xf32> to vector<16x32xf32>
    %14 = arith.addf %12, %13 : vector<16x32xf32>
    %15 = arith.addf %0, %14 : vector<16x32xf32>
    %cst_11 = arith.constant dense<0.000000e+00> : vector<16xf32>
    %16 = vector.multi_reduction <add>, %15, %cst_11 [1] : vector<16x32xf32> to vector<16xf32>
    %17 = vector.shape_cast %16 : vector<16xf32> to vector<16x1xf32>
    %18 = arith.mulf %15, %15 : vector<16x32xf32>
    %cst_12 = arith.constant dense<0.000000e+00> : vector<16xf32>
    %19 = vector.multi_reduction <add>, %18, %cst_12 [1] : vector<16x32xf32> to vector<16xf32>
    %20 = vector.shape_cast %19 : vector<16xf32> to vector<16x1xf32>
    %cst_13 = arith.constant 3.125000e-02 : f32
    %21 = vector.broadcast %cst_13 : f32 to vector<16x1xf32>
    %22 = arith.mulf %17, %21 : vector<16x1xf32>
    %cst_14 = arith.constant 3.125000e-02 : f32
    %23 = vector.broadcast %cst_14 : f32 to vector<16x1xf32>
    %24 = arith.mulf %20, %23 : vector<16x1xf32>
    %25 = arith.mulf %22, %22 : vector<16x1xf32>
    %26 = arith.subf %24, %25 : vector<16x1xf32>
    %cst_15 = arith.constant 0.000000e+00 : f32
    %27 = vector.broadcast %cst_15 : f32 to vector<16x1xf32>
    %28 = arith.maximumf %26, %27 : vector<16x1xf32>
    %cst_16 = arith.constant 9.99999974E-6 : f32
    %29 = vector.broadcast %cst_16 : f32 to vector<16x1xf32>
    %30 = arith.addf %28, %29 : vector<16x1xf32>
    %31 = math.rsqrt %30 : vector<16x1xf32>
    %32 = vector.broadcast %22 : vector<16x1xf32> to vector<16x32xf32>
    %33 = arith.subf %15, %32 : vector<16x32xf32>
    %34 = vector.broadcast %31 : vector<16x1xf32> to vector<16x32xf32>
    %35 = vector.broadcast %5 : vector<1x32xf32> to vector<16x32xf32>
    %36 = arith.mulf %34, %35 : vector<16x32xf32>
    %37 = arith.mulf %33, %36 : vector<16x32xf32>
    %38 = vector.broadcast %6 : vector<1x32xf32> to vector<16x32xf32>
    %39 = arith.addf %37, %38 : vector<16x32xf32>
    %c0_17 = arith.constant 0 : index
    %c0_18 = arith.constant 0 : index
    %40 = vector.load %arg4[%c0_17, %c0_18] : memref<16x32xf32, #tpu.memory_space<vmem>>, vector<16x32xf32>
    tpu.vector_store %arg4[%c0_17, %c0_18], %39 {strides = array<i32>} : memref<16x32xf32, #tpu.memory_space<vmem>>, vector<16x32xf32>,
    return
  }
  func.func @transform_0(%arg0: i32) -> (i32, i32) {
    %c0_i32 = arith.constant 0 : i32
    %c0_i32_0 = arith.constant 0 : i32
    return %arg0, %c0_i32 : i32, i32
  }
  func.func @transform_1(%arg0: i32) -> (i32, i32) {
    %c0_i32 = arith.constant 0 : i32
    %c0_i32_0 = arith.constant 0 : i32
    %c0_i32_1 = arith.constant 0 : i32
    return %c0_i32, %c0_i32_0 : i32, i32
  }
  func.func @transform_2(%arg0: i32) -> (i32, i32) {
    %c0_i32 = arith.constant 0 : i32
    %c0_i32_0 = arith.constant 0 : i32
    %c0_i32_1 = arith.constant 0 : i32
    return %c0_i32, %c0_i32_0 : i32, i32
  }
  func.func @transform_3(%arg0: i32) -> (i32, i32) {
    %c0_i32 = arith.constant 0 : i32
    %c0_i32_0 = arith.constant 0 : i32
    return %arg0, %c0_i32 : i32, i32
  }
}

</mosaic_0001>

<llo_original>
// kernel: attention_output.1
$region0: #{attention_output.1}
  #allocation0 [shape = 'u32[]', space=smem, size = 0x4, offset = 0x4, fixed_abs, tag = 'smem constant byte address 0x4 - core index']
  #allocation1 [shape = 'u32[144,128]{1,0:T(1,128)}', space=vmem, size = 0x12000, scoped, tag = 'internal scratch']
  %s0 = inlined_call_operand.vmem [shape: f32[16,32], index: 0, kind: input, shape index: {}]
  %s1 = inlined_call_operand.vmem [shape: f32[96,64], index: 1, kind: input, shape index: {}]
  %s2 = inlined_call_operand.vmem [shape: f32[8,64], index: 2, kind: input, shape index: {}]
  %s3 = inlined_call_operand.hbm [shape: f32[16,32], index: 3, kind: output, shape index: {}]
  %s4 = sld [smem:[#allocation0]]
  $region22: #{attention_output.1} parent=0
    _
  %s6 = ssub.s32 1, %s4
  %s7 = scalar_select 0, %s6, %s4
  $region1: #{attention_output.1} parent=0
    #allocation2 [shape = 'u8[8192]{0}', space=vmem, size = 0x2000, scoped, tag = 'output window, operand 0, single buffered']
    #allocation3 [shape = 's32[1]{0}', space=sflag, size = 0x4, scoped, tag = 'scoped memory for attention_output.1']
    %8 = vsyncpa [#allocation3], 0
    // Predicated region
    $region2: #{attention_output.1} parent=1 // pred_check
      _
    $region3: #{attention_output.1} parent=1 // pred_check_branch
      %10 = sbr.rel (0) target = $region5
    $region4: #{attention_output.1} parent=1 // pred_region
      _
    $region5: #{attention_output.1} parent=1 // pred_fallthru
      _
    // Predicated region
    $region6: #{attention_output.1} parent=1 // pred_check
      _
    $region7: #{attention_output.1} parent=1 // pred_check_branch
      %12 = sbr.rel (0) target = $region9
    $region8: #{attention_output.1} parent=1 // pred_region
      _
    $region9: #{attention_output.1} parent=1 // pred_fallthru
      _
    // Predicated region
    $region10: #{attention_output.1} parent=1 // pred_check
      _
    $region11: #{attention_output.1} parent=1 // pred_check_branch
      %14 = sbr.rel (0) target = $region13
    $region12: #{attention_output.1} parent=1 // pred_region
      _
    $region13: #{attention_output.1} parent=1 // pred_fallthru
      _
    %v15 = vld [vmem:[%s0] sm:$0xff]
    %v16 = vld [vmem:[%s0 + $0x8] sm:$0xff]
    %v17 = vld [vmem:[%s1] sm:$0xff]
    %v18 = vld [vmem:[%s1 + $0x8] sm:$0xff]
    %v19 = vld [vmem:[%s1 + $0x10] sm:$0xff]
    %v20 = vld [vmem:[%s1 + $0x18] sm:$0xff]
    %v21 = vld [vmem:[%s1 + $0x20] sm:$0xff]
    %v22 = vld [vmem:[%s1 + $0x28] sm:$0xff]
    %v23 = vld [vmem:[%s1 + $0x30] sm:$0xff]
    %v24 = vld [vmem:[%s1 + $0x38] sm:$0xff]
    %v25 = vld [vmem:[%s1 + $0x40] sm:$0xff]
    %v26 = vld [vmem:[%s1 + $0x48] sm:$0xff]
    %v27 = vld [vmem:[%s1 + $0x50] sm:$0xff]
    %v28 = vld [vmem:[%s1 + $0x58] sm:$0xff]
    %v29 = vld [vmem:[%s2] sm:$0x1]
    %v30 = vld [vmem:[%s2 + $0x1] sm:$0x1]
    %v31 = vld [vmem:[%s2 + $0x2] sm:$0x1]
    %v32 = vld [vmem:[%s2 + $0x3] sm:$0x1]
    %v33 = vlaneseq
    %v34 = vshrl.u32 %v33, 7
    %v35 = vsub.s32 0, %v34
    %v36 = vrot.slane %v29, %v35
    %vm37 = vcmask 261120
    %v39 = vsel %vm37, %v15, 0
    %v42 = vsel %vm37, %v16, 0
    %44 = vmatprep.subr.mxu0 0.0
    %45 = vmatpush1.msra.mxu0 %v17
    %46 = vmatprep.subr.mxu0 0.0
    %47 = vmatpush1.msra.mxu0 %v18
    %48 = vmatprep.subr.mxu0 0.0
    %49 = vmatpush1.msra.mxu0 %v19
    %50 = vmatprep.subr.mxu0 0.0
    %51 = vmatpush1.msra.mxu0 %v20
    %52 = vmatprep.subr.mxu0 0.0
    %53 = vmatpush1.msra.mxu0 0.0
    %54 = vmatprep.subr.mxu0 0.0
    %55 = vmatpush1.msra.mxu0 0.0
    %56 = vmatprep.subr.mxu0 0.0
    %57 = vmatpush1.msra.mxu0 0.0
    %58 = vmatprep.subr.mxu0 0.0
    %59 = vmatpush1.msra.mxu0 0.0
    %60 = vmatprep.subr.mxu0 0.0
    %61 = vmatpush1.msra.mxu0 0.0
    %62 = vmatprep.subr.mxu0 0.0
    %63 = vmatpush1.msra.mxu0 0.0
    %64 = vmatprep.subr.mxu0 0.0
    %65 = vmatpush1.msra.mxu0 0.0
    %66 = vmatprep.subr.mxu0 0.0
    %67 = vmatpush1.msra.mxu0 0.0
    %68 = vmatprep.subr.mxu0 0.0
    %69 = vmatpush1.msra.mxu0 0.0
    %70 = vmatprep.subr.mxu0 0.0
    %71 = vmatpush1.msra.mxu0 0.0
    %72 = vmatprep.subr.mxu0 0.0
    %73 = vmatpush1.msra.mxu0 0.0
    %74 = vmatprep.subr.mxu0 0.0
    %75 = vmatpush1.msra.mxu0 0.0
    %76 = vmatprep.subr.mxu0 0.0
    %77 = vmatpush1.msra.mxu0 0.0
    %78 = vmatprep.subr.mxu0 0.0
    %79 = vmatpush1.msra.mxu0 0.0
    %80 = vmatprep.subr.mxu0 0.0
    %81 = vmatpush1.msra.mxu0 0.0
    %82 = vmatprep.subr.mxu0 0.0
    %83 = vmatpush1.msra.mxu0 0.0
    %84 = vmatprep.subr.mxu0 0.0
    %85 = vmatpush1.msra.mxu0 0.0
    %86 = vmatprep.subr.mxu0 0.0
    %87 = vmatpush1.msra.mxu0 0.0
    %88 = vmatprep.subr.mxu0 0.0
    %89 = vmatpush1.msra.mxu0 0.0
    %90 = vmatprep.subr.mxu0 0.0
    %91 = vmatpush1.msra.mxu0 0.0
    %92 = vmatprep.subr.mxu0 0.0
    %93 = vmatpush1.msra.mxu0 0.0
    %94 = vmatprep.subr.mxu0 0.0
    %95 = vmatpush1.msra.mxu0 0.0
    %96 = vmatprep.subr.mxu0 0.0
    %97 = vmatpush1.msra.mxu0 0.0
    %98 = vmatprep.subr.mxu0 0.0
    %99 = vmatpush1.msra.mxu0 0.0
    %100 = vmatprep.subr.mxu0 0.0
    %101 = vmatpush1.msra.mxu0 0.0
    %102 = vmatprep.subr.mxu0 0.0
    %103 = vmatpush1.msra.mxu0 0.0
    %104 = vmatprep.subr.mxu0 0.0
    %105 = vmatpush1.msra.mxu0 0.0
    %106 = vmatprep.subr.mxu0 0.0
    %107 = vmatpush1.msra.mxu0 0.0
    %108 = vmatprep.mubr.f32.mxu0 0.0
    %109 = vmatmul.mubr.f32.gmra.mrb[0].mxu0 %v39
    %v110 = vpop.f32.mrb[0].mxu0
    %v111 = vadd.f32 %v36, %v110
    %v112 = vpop.f32.mrb[0].mxu0
    %113 = vmatprep.mubr.f32.mxu0 0.0
    %114 = vmatmul.mubr.f32.gmra.mrb[0].mxu0 %v42
    %v115 = vpop.f32.mrb[0].mxu0
    %v116 = vadd.f32 %v36, %v115
    %v117 = vpop.f32.mrb[0].mxu0
    %118 = vdwg.mxu0
    %v119 = vmax.f32 %v111, 0.0
    %v120 = vmax.f32 %v116, 0.0
    %v121 = vlaneseq
    %v122 = vshrl.u32 %v121, 7
    %v123 = vsub.s32 0, %v122
    %v124 = vrot.slane %v30, %v123
    %vm125 = vcmask 523264
    %v127 = vsel %vm125, %v119, 0
    %v130 = vsel %vm125, %v120, 0
    %132 = vmatprep.subr.mxu0 0.0
    %133 = vmatpush1.msra.mxu0 %v21
    %134 = vmatprep.subr.mxu0 0.0
    %135 = vmatpush1.msra.mxu0 %v22
    %136 = vmatprep.subr.mxu0 0.0
    %137 = vmatpush1.msra.mxu0 %v23
    %138 = vmatprep.subr.mxu0 0.0
    %139 = vmatpush1.msra.mxu0 %v24
    %140 = vmatprep.subr.mxu0 0.0
    %141 = vmatpush1.msra.mxu0 %v25
    %142 = vmatprep.subr.mxu0 0.0
    %143 = vmatpush1.msra.mxu0 %v26
    %144 = vmatprep.subr.mxu0 0.0
    %145 = vmatpush1.msra.mxu0 %v27
    %146 = vmatprep.subr.mxu0 0.0
    %147 = vmatpush1.msra.mxu0 %v28
    %148 = vmatprep.subr.mxu0 0.0
    %149 = vmatpush1.msra.mxu0 0.0
    %150 = vmatprep.subr.mxu0 0.0
    %151 = vmatpush1.msra.mxu0 0.0
    %152 = vmatprep.subr.mxu0 0.0
    %153 = vmatpush1.msra.mxu0 0.0
    %154 = vmatprep.subr.mxu0 0.0
    %155 = vmatpush1.msra.mxu0 0.0
    %156 = vmatprep.subr.mxu0 0.0
    %157 = vmatpush1.msra.mxu0 0.0
    %158 = vmatprep.subr.mxu0 0.0
    %159 = vmatpush1.msra.mxu0 0.0
    %160 = vmatprep.subr.mxu0 0.0
    %161 = vmatpush1.msra.mxu0 0.0
    %162 = vmatprep.subr.mxu0 0.0
    %163 = vmatpush1.msra.mxu0 0.0
    %164 = vmatprep.subr.mxu0 0.0
    %165 = vmatpush1.msra.mxu0 0.0
    %166 = vmatprep.subr.mxu0 0.0
    %167 = vmatpush1.msra.mxu0 0.0
    %168 = vmatprep.subr.mxu0 0.0
    %169 = vmatpush1.msra.mxu0 0.0
    %170 = vmatprep.subr.mxu0 0.0
    %171 = vmatpush1.msra.mxu0 0.0
    %172 = vmatprep.subr.mxu0 0.0
    %173 = vmatpush1.msra.mxu0 0.0
    %174 = vmatprep.subr.mxu0 0.0
    %175 = vmatpush1.msra.mxu0 0.0
    %176 = vmatprep.subr.mxu0 0.0
    %177 = vmatpush1.msra.mxu0 0.0
    %178 = vmatprep.subr.mxu0 0.0
    %179 = vmatpush1.msra.mxu0 0.0
    %180 = vmatprep.subr.mxu0 0.0
    %181 = vmatpush1.msra.mxu0 0.0
    %182 = vmatprep.subr.mxu0 0.0
    %183 = vmatpush1.msra.mxu0 0.0
    %184 = vmatprep.subr.mxu0 0.0
    %185 = vmatpush1.msra.mxu0 0.0
    %186 = vmatprep.subr.mxu0 0.0
    %187 = vmatpush1.msra.mxu0 0.0
    %188 = vmatprep.subr.mxu0 0.0
    %189 = vmatpush1.msra.mxu0 0.0
    %190 = vmatprep.subr.mxu0 0.0
    %191 = vmatpush1.msra.mxu0 0.0
    %192 = vmatprep.subr.mxu0 0.0
    %193 = vmatpush1.msra.mxu0 0.0
    %194 = vmatprep.subr.mxu0 0.0
    %195 = vmatpush1.msra.mxu0 0.0
    %196 = vmatprep.mubr.f32.mxu0 0.0
    %197 = vmatmul.mubr.f32.gmra.mrb[0].mxu0 %v127
    %v198 = vpop.f32.mrb[0].mxu0
    %v199 = vadd.f32 %v124, %v198
    %v200 = vpop.f32.mrb[0].mxu0
    %201 = vmatprep.mubr.f32.mxu0 0.0
    %202 = vmatmul.mubr.f32.gmra.mrb[0].mxu0 %v130
    %v203 = vpop.f32.mrb[0].mxu0
    %v204 = vadd.f32 %v124, %v203
    %v205 = vpop.f32.mrb[0].mxu0
    %206 = vdwg.mxu0
    %v207 = vadd.f32 %v15, %v199
    %v208 = vadd.f32 %v16, %v204
    %v209 = vsel %vm37, %v207, 0.0
    %210 = vadd.xlane.f32.xlu0 %v209
    %v211 = vpop.xlane.xlu0 %210
    %v212 = vsel %vm37, %v208, 0.0
    %213 = vadd.xlane.f32.xlu0 %v212
    %v214 = vpop.xlane.xlu0 %213
    %v215 = vmul.f32 %v207, %v207
    %v216 = vmul.f32 %v208, %v208
    %v217 = vsel %vm37, %v215, 0.0
    %218 = vadd.xlane.f32.xlu0 %v217
    %v219 = vpop.xlane.xlu0 %218
    %v220 = vsel %vm37, %v216, 0.0
    %221 = vadd.xlane.f32.xlu0 %v220
    %v222 = vpop.xlane.xlu0 %221
    %v223 = vmul.f32 %v211, 0.03125
    %v224 = vmul.f32 %v214, 0.03125
    %v225 = vmul.f32 %v219, 0.03125
    %v226 = vmul.f32 %v222, 0.03125
    %v227 = vmul.f32 %v223, %v223
    %v228 = vmul.f32 %v224, %v224
    %v229 = vsub.f32 %v225, %v227
    %v230 = vsub.f32 %v226, %v228
    %v231 = vmax.f32 %v229, 0.0
    %v232 = vmax.f32 %v230, 0.0
    %v233 = vadd.f32 %v231, 1e-05
    %v234 = vadd.f32 %v232, 1e-05
    %v235 = vrsqrt.pop %v233
    %v236 = vrsqrt.pop %v234
    %v237 = vsub.f32 %v207, %v223
    %v238 = vsub.f32 %v208, %v224
    %v239 = vlaneseq
    %v240 = vshrl.u32 %v239, 7
    %v241 = vsub.s32 0, %v240
    %v242 = vrot.slane %v31, %v241
    %v243 = vmul.f32 %v235, %v242
    %v244 = vmul.f32 %v236, %v242
    %v245 = vmul.f32 %v237, %v243
    %v246 = vmul.f32 %v238, %v244
    %v247 = vlaneseq
    %v248 = vshrl.u32 %v247, 7
    %v249 = vsub.s32 0, %v248
    %v250 = vrot.slane %v32, %v249
    %v251 = vadd.f32 %v245, %v250
    %v252 = vadd.f32 %v246, %v250
    %253 = vst.msk [vmem:[#allocation2] sm:$0xff] %vm37, %v251
    %254 = vst.msk [vmem:[#allocation2 + $0x8] sm:$0xff] %vm37, %v252
    // Predicated region
    $region14: #{attention_output.1} parent=1 // pred_check
      _
    $region15: #{attention_output.1} parent=1 // pred_check_branch
      %256 = sbr.rel (0) target = $region17
    $region16: #{attention_output.1} parent=1 // pred_region
      %s258 = ssub.s32 256, 256
      %259 = vsyncadd [#allocation3], %s258
      %s260 = sshll.u32 [#allocation2], 4
      %s261 = int_to_ptr.vmem [resolvable:$true] %s260
      %266 = dma.vmem_to_hbm [thread:$0]  %s261, 256, %s3, [#allocation3], 128, 128, 8
    $region17: #{attention_output.1} parent=1 // pred_fallthru
      _
    // Predicated region
    $region18: #{attention_output.1} parent=1 // pred_check
      _
    $region19: #{attention_output.1} parent=1 // pred_check_branch
      %268 = sbr.rel (0) target = $region21
    $region20: #{attention_output.1} parent=1 // pred_region
      %269 = dma.done [#allocation3], 256
    $region21: #{attention_output.1} parent=1 // pred_fallthru
      _
    %270 = vsyncpa [#allocation3], 1

</llo_original>
